<compile_context>
chip_gen: v7x
topology: tpu7x:2x2x1
jax: 0.10.0
libtpu: 0.0.40
codegen_flags: <defaults>
</compile_context>

<pallas_src>
import math
import jax
import jax.numpy as jnp
from jax.experimental import pallas as pl
from jax.experimental.pallas import tpu as pltpu


def _sigmoid(x):
    # sigmoid(x) = 0.5 * tanh(0.5 * x) + 0.5 -> single EUP op (vs exp + reciprocal).
    return 0.5 * jnp.tanh(0.5 * x) + 0.5


def _round_up(n, m):
    return ((n + m - 1) // m) * m


# --------------------------------------------------------------------------- #
# Kernel body
# --------------------------------------------------------------------------- #
def _peephole_lstm_kernel(xh_ref, c_ref, w_ref, b_ref, wc_ref, h_out_ref, c_out_ref):
    tH = c_ref.shape[1]

    xh = xh_ref[...]                           # (tB, K_pad) bf16 (cast in wrapper)
    c = c_ref[...].astype(jnp.float32)         # (tB, tH)     f32 compute

    # One MXU pass produces all four gate pre-activations for this hidden tile.
    gates = jnp.dot(xh, w_ref[...], preferred_element_type=jnp.float32)
    gates = gates + b_ref[...]                 # (tB, 4*tH) + (1, 4*tH)

    # 128-aligned static slices (tile_h is a multiple of 128 when H >= 128).
    i_lin = gates[:, 0 * tH:1 * tH]
    f_lin = gates[:, 1 * tH:2 * tH]
    o_lin = gates[:, 2 * tH:3 * tH]
    g_lin = gates[:, 3 * tH:4 * tH]

    wci = wc_ref[0:1, :]                       # keep 2-D for clean lane broadcast
    wcf = wc_ref[1:2, :]
    wco = wc_ref[2:3, :]

    # Fused elementwise epilogue (no intermediates stored back to VMEM).
    it = _sigmoid(i_lin + wci * c)
    ft = _sigmoid(f_lin + wcf * c)
    c_new = ft * c + it * jnp.tanh(g_lin)
    ot = _sigmoid(o_lin + wco * c_new)
    h_new = ot * jnp.tanh(c_new)

    h_out_ref[...] = h_new.astype(h_out_ref.dtype)
    c_out_ref[...] = c_new.astype(c_out_ref.dtype)


# --------------------------------------------------------------------------- #
# Tiling / VMEM budgeting
# --------------------------------------------------------------------------- #
def _choose_tiles(B, H, K_pad):
    """Pick (tile_b, tile_h, H_pad) with K-aware VMEM budgeting.

    Weight block (K_pad, 4*tile_h) bf16 is capped at ~8 MiB so that with
    double-buffering the whole pipeline stays well inside v7x's 64 MiB VMEM
    (and the 16/32 MiB default scoped limits elsewhere).
    """
    # Batch tile: up to 256 (fills v6e/v7x 256-wide MXU M dim), multiple of 8.
    if B <= 256:
        tile_b = B
    else:
        tile_b = next((t for t in (256, 128, 64, 32, 16, 8) if B % t == 0), B)

    if H < 128:
        return tile_b, H, H                    # full (small) hidden dim, no pad

    H_pad = _round_up(H, 128)
    weight_blk_budget = 8 << 20                # single weight block, bytes (bf16)
    tile_h = 128
    for t in (512, 256, 128):
        if H_pad % t == 0 and K_pad * 4 * t * 2 <= weight_blk_budget:
            tile_h = t
            break
    return tile_b, tile_h, H_pad


def _vmem_limit_bytes(tile_b, tile_h, K_pad):
    """Explicit scoped-VMEM request derived from the chosen block sizes."""
    w_blk = K_pad * 4 * tile_h * 2             # bf16 weight block
    xh_blk = tile_b * K_pad * 2                # bf16 LHS block
    c_blk = tile_b * tile_h * 4
    b_blk = 8 * 4 * tile_h * 4                 # (1, 4*tH) padded to 8 sublanes
    wc_blk = 8 * tile_h * 4                    # (3, tH)  padded to 8 sublanes
    out_blk = 2 * tile_b * tile_h * 4
    double_buffered = 2 * (w_blk + xh_blk + c_blk + b_blk + wc_blk + out_blk)
    temps = 3 * tile_b * 4 * tile_h * 4        # gates + epilogue live values
    est = double_buffered + temps
    # Headroom, clamped to v7x physical (64 MiB); fine on v5e/v6e (128 MiB).
    return int(min(max(2 * est, 32 << 20), 64 << 20))


# --------------------------------------------------------------------------- #
# Parameter packing (do once at init)
# --------------------------------------------------------------------------- #
def pack_params(w4, b4, wc, tile_h, k_pad, h_pad, weight_dtype=jnp.bfloat16):
    """Pack canonical params into the kernel layout (ONE time cost).

    * zero-pads the contraction axis to k_pad (aligned MXU passes) and the
      hidden axis to h_pad (lane-dense 128-multiple tiles),
    * reorders the 4H gate axis so each hidden tile's [i|f|o|g] column blocks
      are contiguous: a (K_pad, 4*tile_h) BlockSpec block holds exactly what
      one grid step needs, lane-dense,
    * casts the weights to bf16 (MXU accumulates in f32 via
      preferred_element_type).
    """
    K, G, H = w4.shape
    assert G == 4 and h_pad % tile_h == 0
    if h_pad > H:
        w4 = jnp.pad(w4, ((0, 0), (0, 0), (0, h_pad - H)))
        b4 = jnp.pad(b4, ((0, 0), (0, h_pad - H)))
        wc = jnp.pad(wc, ((0, 0), (0, h_pad - H)))
    if k_pad > K:
        w4 = jnp.pad(w4, ((0, k_pad - K), (0, 0), (0, 0)))
    nT = h_pad // tile_h
    w = (w4.reshape(k_pad, 4, nT, tile_h)
            .transpose(0, 2, 1, 3)
            .reshape(k_pad, 4 * h_pad)).astype(weight_dtype)
    b = (b4.reshape(4, nT, tile_h)
            .transpose(1, 0, 2)
            .reshape(1, 4 * h_pad)).astype(jnp.float32)
    return w, b, wc.astype(jnp.float32)


# --------------------------------------------------------------------------- #
# Wrapper
# --------------------------------------------------------------------------- #
def peephole_lstm_cell(x, h, c, w_packed, b_packed, wc_packed, *, tile_b, tile_h):
    """Single-step peephole LSTM cell.  w_packed/b_packed/wc_packed from pack_params.

    # TODO(synk): for the real recurrent use case add a time axis (outer grid axis
    # or in-kernel fori_loop) whose weight index_map ignores t so the packed
    # weights stay VMEM-resident across timesteps (turns the layer compute-bound),
    # keep Wx/Wh separate there to drop the per-step [x|h] concat, and if a
    # K-reduction grid axis is ever added, gate the epilogue + the aliased c write
    # with pl.when(k == last).
    """
    B, I = x.shape
    _, H = h.shape
    K = I + H
    K_pad, four_h_pad = w_packed.shape
    H_pad = four_h_pad // 4
    assert K_pad >= K and H_pad >= H
    assert B % tile_b == 0 and H_pad % tile_h == 0

    # Fused LHS, cast to bf16 in the wrapper (half the HBM/VMEM traffic).
    xh = jnp.concatenate([x, h], axis=1).astype(jnp.bfloat16)
    if K_pad > K:
        xh = jnp.pad(xh, ((0, 0), (0, K_pad - K)))
    c_in = c if H_pad == H else jnp.pad(c, ((0, 0), (0, H_pad - H)))

    # Grid: hidden tiles OUTER, batch tiles INNER -> weight block index (0, j)
    # is constant across the inner axis, so its DMA is skipped on revisits.
    # (For v7x megacore, prefer shapes giving >= 2 steps on a parallel axis.)
    grid = (H_pad // tile_h, B // tile_b)
    grid_spec = pltpu.PrefetchScalarGridSpec(
        num_scalar_prefetch=0,
        grid=grid,
        in_specs=[
            pl.BlockSpec((tile_b, K_pad),     lambda j, i: (i, 0)),   # [x|h] bf16
            pl.BlockSpec((tile_b, tile_h),    lambda j, i: (i, j)),   # c
            pl.BlockSpec((K_pad, 4 * tile_h), lambda j, i: (0, j)),   # packed W bf16
            pl.BlockSpec((1, 4 * tile_h),     lambda j, i: (0, j)),   # packed bias
            pl.BlockSpec((3, tile_h),         lambda j, i: (0, j)),   # peepholes
        ],
        out_specs=(
            pl.BlockSpec((tile_b, tile_h),    lambda j, i: (i, j)),   # h_new
            pl.BlockSpec((tile_b, tile_h),    lambda j, i: (i, j)),   # c_new
        ),
    )

    h_new, c_new = pl.pallas_call(
        _peephole_lstm_kernel,
        out_shape=(jax.ShapeDtypeStruct((B, H_pad), h.dtype),
                   jax.ShapeDtypeStruct((B, H_pad), c.dtype)),
        grid_spec=grid_spec,
        input_output_aliases={1: 1},           # c_new reuses c's HBM buffer
        compiler_params=pltpu.CompilerParams(
            dimension_semantics=("parallel", "parallel"),
            vmem_limit_bytes=_vmem_limit_bytes(tile_b, tile_h, K_pad)),
    )(xh, c_in, w_packed, b_packed, wc_packed)

    if H_pad > H:
        h_new = h_new[:, :H]
        c_new = c_new[:, :H]
    return h_new, c_new


# --------------------------------------------------------------------------- #
# Init + pure-JAX reference (matches the PyTorch module)
# --------------------------------------------------------------------------- #
def init_params(key, input_size, hidden_size, dtype=jnp.float32):
    """Matches the PyTorch module init: Xavier-uniform Linear weights, zero biases,
    zero peepholes.  Returns canonical fused params (gate order [i, f, o, g])."""
    keys = jax.random.split(key, 8)

    def xavier(k, out_f, in_f):
        lim = math.sqrt(6.0 / (in_f + out_f))
        return jax.random.uniform(k, (out_f, in_f), dtype, -lim, lim)

    Wx = [xavier(keys[2 * g], hidden_size, input_size) for g in range(4)]
    Wh = [xavier(keys[2 * g + 1], hidden_size, hidden_size) for g in range(4)]
    # (I+H, 4, H): per gate, stack [Wx_g.T ; Wh_g.T] along the contraction axis.
    w4 = jnp.stack(
        [jnp.concatenate([wx.T, wh.T], axis=0) for wx, wh in zip(Wx, Wh)], axis=1)
    b4 = jnp.zeros((4, hidden_size), dtype)   # Linear biases are zero-initialized
    wc = jnp.zeros((3, hidden_size), dtype)   # Wci / Wcf / Wco
    return w4, b4, wc


def reference(x, h, c, w4, b4, wc):
    """Pure-JAX reference of the PyTorch forward, with the same bf16 rounding of
    the matmul operands the kernel applies."""
    xh = jnp.concatenate([x, h], axis=1)
    xh_b = xh.astype(jnp.bfloat16).astype(jnp.float32)
    w_b = w4.astype(jnp.bfloat16).astype(jnp.float32)
    gates = jnp.einsum('bk,kgh->bgh', xh_b, w_b,
                       preferred_element_type=jnp.float32) + b4[None]
    i_lin, f_lin, o_lin, g_lin = (gates[:, g] for g in range(4))
    it = _sigmoid(i_lin + wc[0] * c)
    ft = _sigmoid(f_lin + wc[1] * c)
    c_new = ft * c + it * jnp.tanh(g_lin)
    ot = _sigmoid(o_lin + wc[2] * c_new)
    return ot * jnp.tanh(c_new), c_new


if __name__ == "__main__":
    B, I, H = 8, 16, 32
    key = jax.random.PRNGKey(0)
    kx, kh, kc, kp = jax.random.split(key, 4)

    x = jax.random.normal(kx, (B, I), jnp.float32)
    h = jax.random.normal(kh, (B, H), jnp.float32)
    c = jax.random.normal(kc, (B, H), jnp.float32)
    w4, b4, wc = init_params(kp, I, H)

    K_pad = _round_up(I + H, 128)                       # aligned MXU contraction
    tile_b, tile_h, H_pad = _choose_tiles(B, H, K_pad)
    w_p, b_p, wc_p = pack_params(w4, b4, wc, tile_h, K_pad, H_pad)  # once at init

    h_ref, c_ref = reference(x, h, c, w4, b4, wc)

    h_new, c_new = peephole_lstm_cell(x, h, c, w_p, b_p, wc_p,
                                      tile_b=tile_b, tile_h=tile_h)
    jax.block_until_ready((h_new, c_new))

    assert h_new.shape == (B, H) and c_new.shape == (B, H)
    assert jnp.allclose(h_new, h_ref, atol=2e-3, rtol=2e-3)
    assert jnp.allclose(c_new, c_ref, atol=2e-3, rtol=2e-3)

    print("KERNEL_OK")
</pallas_src>

<mosaic_0001>
module attributes {stable_mosaic.version = 11 : i64} {
  func.func @_peephole_lstm_kernel(%arg0: i32, %arg1: i32, %arg2: memref<8x128xbf16, #tpu.memory_space<vmem>>, %arg3: memref<8x32xf32, #tpu.memory_space<vmem>>, %arg4: memref<128x128xbf16, #tpu.memory_space<vmem>>, %arg5: memref<1x128xf32, #tpu.memory_space<vmem>>, %arg6: memref<3x32xf32, #tpu.memory_space<vmem>>, %arg7: memref<8x32xf32, #tpu.memory_space<vmem>>, %arg8: memref<8x32xf32, #tpu.memory_space<vmem>>) attributes {dimension_semantics = [#tpu.dimension_semantics<parallel>, #tpu.dimension_semantics<parallel>], iteration_bounds = array<i64: 1, 1>, scalar_prefetch = 0 : i64, scratch_operands = 0 : i64, tpu.core_type = #tpu.core_type<tc>, window_params = [{transform_indices = @transform_0, window_bounds = array<i64: 8, 128>}, {transform_indices = @transform_1, window_bounds = array<i64: 8, 32>}, {transform_indices = @transform_2, window_bounds = array<i64: 128, 128>}, {transform_indices = @transform_3, window_bounds = array<i64: 1, 128>}, {transform_indices = @transform_4, window_bounds = array<i64: 3, 32>}, {transform_indices = @transform_5, window_bounds = array<i64: 8, 32>}, {transform_indices = @transform_6, window_bounds = array<i64: 8, 32>}]} {
    %c0 = arith.constant 0 : index
    %c0_0 = arith.constant 0 : index
    %0 = vector.load %arg2[%c0, %c0_0] : memref<8x128xbf16, #tpu.memory_space<vmem>>, vector<8x128xbf16>
    %c0_1 = arith.constant 0 : index
    %c0_2 = arith.constant 0 : index
    %1 = vector.load %arg3[%c0_1, %c0_2] : memref<8x32xf32, #tpu.memory_space<vmem>>, vector<8x32xf32>
    %c0_3 = arith.constant 0 : index
    %c0_4 = arith.constant 0 : index
    %2 = vector.load %arg4[%c0_3, %c0_4] : memref<128x128xbf16, #tpu.memory_space<vmem>>, vector<128x128xbf16>
    %cst = arith.constant dense<0.000000e+00> : vector<8x128xf32>
    %3 = tpu.matmul %0, %2, %cst {dimension_numbers = #tpu.dot_dimension_numbers<[1], [0], [0], [1], [0, 0, 1, 1], [], []>} : vector<8x128xbf16>, vector<128x128xbf16>, vector<8x128xf32> -> vector<8x128xf32>
    %c0_5 = arith.constant 0 : index
    %c0_6 = arith.constant 0 : index
    %4 = vector.load %arg5[%c0_5, %c0_6] : memref<1x128xf32, #tpu.memory_space<vmem>>, vector<1x128xf32>
    %5 = vector.broadcast %4 : vector<1x128xf32> to vector<8x128xf32>
    %6 = arith.addf %3, %5 : vector<8x128xf32>
    %7 = vector.extract_strided_slice %6 {offsets = [0, 0], sizes = [8, 32], strides = [1, 1]} : vector<8x128xf32> to vector<8x32xf32>
    %8 = vector.extract_strided_slice %6 {offsets = [0, 32], sizes = [8, 32], strides = [1, 1]} : vector<8x128xf32> to vector<8x32xf32>
    %9 = vector.extract_strided_slice %6 {offsets = [0, 64], sizes = [8, 32], strides = [1, 1]} : vector<8x128xf32> to vector<8x32xf32>
    %10 = vector.extract_strided_slice %6 {offsets = [0, 96], sizes = [8, 32], strides = [1, 1]} : vector<8x128xf32> to vector<8x32xf32>
    %c0_7 = arith.constant 0 : index
    %c0_8 = arith.constant 0 : index
    %11 = vector.load %arg6[%c0_7, %c0_8] : memref<3x32xf32, #tpu.memory_space<vmem>>, vector<1x32xf32>
    %c1 = arith.constant 1 : index
    %c0_9 = arith.constant 0 : index
    %12 = vector.load %arg6[%c1, %c0_9] : memref<3x32xf32, #tpu.memory_space<vmem>>, vector<1x32xf32>
    %c2 = arith.constant 2 : index
    %c0_10 = arith.constant 0 : index
    %13 = vector.load %arg6[%c2, %c0_10] : memref<3x32xf32, #tpu.memory_space<vmem>>, vector<1x32xf32>
    %14 = vector.broadcast %11 : vector<1x32xf32> to vector<8x32xf32>
    %15 = arith.mulf %14, %1 : vector<8x32xf32>
    %16 = arith.addf %7, %15 : vector<8x32xf32>
    %cst_11 = arith.constant 5.000000e-01 : f32
    %17 = vector.broadcast %cst_11 : f32 to vector<8x32xf32>
    %18 = arith.mulf %17, %16 : vector<8x32xf32>
    %19 = math.tanh %18 : vector<8x32xf32>
    %cst_12 = arith.constant 5.000000e-01 : f32
    %20 = vector.broadcast %cst_12 : f32 to vector<8x32xf32>
    %21 = arith.mulf %20, %19 : vector<8x32xf32>
    %cst_13 = arith.constant 5.000000e-01 : f32
    %22 = vector.broadcast %cst_13 : f32 to vector<8x32xf32>
    %23 = arith.addf %21, %22 : vector<8x32xf32>
    %24 = vector.broadcast %12 : vector<1x32xf32> to vector<8x32xf32>
    %25 = arith.mulf %24, %1 : vector<8x32xf32>
    %26 = arith.addf %8, %25 : vector<8x32xf32>
    %cst_14 = arith.constant 5.000000e-01 : f32
    %27 = vector.broadcast %cst_14 : f32 to vector<8x32xf32>
    %28 = arith.mulf %27, %26 : vector<8x32xf32>
    %29 = math.tanh %28 : vector<8x32xf32>
    %cst_15 = arith.constant 5.000000e-01 : f32
    %30 = vector.broadcast %cst_15 : f32 to vector<8x32xf32>
    %31 = arith.mulf %30, %29 : vector<8x32xf32>
    %cst_16 = arith.constant 5.000000e-01 : f32
    %32 = vector.broadcast %cst_16 : f32 to vector<8x32xf32>
    %33 = arith.addf %31, %32 : vector<8x32xf32>
    %34 = arith.mulf %33, %1 : vector<8x32xf32>
    %35 = math.tanh %10 : vector<8x32xf32>
    %36 = arith.mulf %23, %35 : vector<8x32xf32>
    %37 = arith.addf %34, %36 : vector<8x32xf32>
    %38 = vector.broadcast %13 : vector<1x32xf32> to vector<8x32xf32>
    %39 = arith.mulf %38, %37 : vector<8x32xf32>
    %40 = arith.addf %9, %39 : vector<8x32xf32>
    %cst_17 = arith.constant 5.000000e-01 : f32
    %41 = vector.broadcast %cst_17 : f32 to vector<8x32xf32>
    %42 = arith.mulf %41, %40 : vector<8x32xf32>
    %43 = math.tanh %42 : vector<8x32xf32>
    %cst_18 = arith.constant 5.000000e-01 : f32
    %44 = vector.broadcast %cst_18 : f32 to vector<8x32xf32>
    %45 = arith.mulf %44, %43 : vector<8x32xf32>
    %cst_19 = arith.constant 5.000000e-01 : f32
    %46 = vector.broadcast %cst_19 : f32 to vector<8x32xf32>
    %47 = arith.addf %45, %46 : vector<8x32xf32>
    %48 = math.tanh %37 : vector<8x32xf32>
    %49 = arith.mulf %47, %48 : vector<8x32xf32>
    %c0_20 = arith.constant 0 : index
    %c0_21 = arith.constant 0 : index
    %50 = vector.load %arg7[%c0_20, %c0_21] : memref<8x32xf32, #tpu.memory_space<vmem>>, vector<8x32xf32>
    tpu.vector_store %arg7[%c0_20, %c0_21], %49 {strides = array<i32>} : memref<8x32xf32, #tpu.memory_space<vmem>>, vector<8x32xf32>,
    %c0_22 = arith.constant 0 : index
    %c0_23 = arith.constant 0 : index
    %51 = vector.load %arg8[%c0_22, %c0_23] : memref<8x32xf32, #tpu.memory_space<vmem>>, vector<8x32xf32>
    tpu.vector_store %arg8[%c0_22, %c0_23], %37 {strides = array<i32>} : memref<8x32xf32, #tpu.memory_space<vmem>>, vector<8x32xf32>,
    return
  }
  func.func @transform_0(%arg0: i32, %arg1: i32) -> (i32, i32) {
    %c0_i32 = arith.constant 0 : i32
    %c0_i32_0 = arith.constant 0 : i32
    return %arg1, %c0_i32 : i32, i32
  }
  func.func @transform_1(%arg0: i32, %arg1: i32) -> (i32, i32) {
    %c0_i32 = arith.constant 0 : i32
    return %arg1, %arg0 : i32, i32
  }
  func.func @transform_2(%arg0: i32, %arg1: i32) -> (i32, i32) {
    %c0_i32 = arith.constant 0 : i32
    %c0_i32_0 = arith.constant 0 : i32
    return %c0_i32, %arg0 : i32, i32
  }
  func.func @transform_3(%arg0: i32, %arg1: i32) -> (i32, i32) {
    %c0_i32 = arith.constant 0 : i32
    %c0_i32_0 = arith.constant 0 : i32
    return %c0_i32, %arg0 : i32, i32
  }
  func.func @transform_4(%arg0: i32, %arg1: i32) -> (i32, i32) {
    %c0_i32 = arith.constant 0 : i32
    %c0_i32_0 = arith.constant 0 : i32
    return %c0_i32, %arg0 : i32, i32
  }
  func.func @transform_5(%arg0: i32, %arg1: i32) -> (i32, i32) {
    %c0_i32 = arith.constant 0 : i32
    return %arg1, %arg0 : i32, i32
  }
  func.func @transform_6(%arg0: i32, %arg1: i32) -> (i32, i32) {
    %c0_i32 = arith.constant 0 : i32
    return %arg1, %arg0 : i32, i32
  }
}

</mosaic_0001>

<llo_original>
// kernel: tpu_custom_call.1
$region0: #{tpu_custom_call.1}
  #allocation0 [shape = 'u32[]', space=smem, size = 0x4, offset = 0x4, fixed_abs, tag = 'smem constant byte address 0x4 - core index']
  #allocation1 [shape = 'u32[144,128]{1,0:T(1,128)}', space=vmem, size = 0x12000, scoped, tag = 'internal scratch']
  %s0 = inlined_call_operand.vmem [shape: bf16[8,128], index: 0, kind: input, shape index: {}]
  %s1 = inlined_call_operand.hbm [shape: f32[8,32], index: 1, kind: input, shape index: {}, may-alias: {1,6}]
  %s2 = inlined_call_operand.hbm [shape: bf16[128,128], index: 2, kind: input, shape index: {}]
  %s3 = inlined_call_operand.vmem [shape: f32[1,128], index: 3, kind: input, shape index: {}]
  %s4 = inlined_call_operand.vmem [shape: f32[3,32], index: 4, kind: input, shape index: {}]
  %s5 = inlined_call_operand.hbm [shape: f32[8,32], index: 5, kind: output, shape index: {0}]
  %s6 = inlined_call_operand.hbm [shape: f32[8,32], index: 6, kind: output, shape index: {1}, may-alias: {1,6}]
  %7 = xla_tuple %s5, %s6
  %s8 = sld [smem:[#allocation0]]
  $region46: #{tpu_custom_call.1} parent=0
    _
  %s10 = ssub.s32 1, %s8
  %s11 = scalar_select 0, %s10, %s8
  $region1: #{tpu_custom_call.1} parent=0
    #allocation2 [shape = 'u8[4096]{0}', space=vmem, size = 0x1000, scoped, tag = 'input window, operand 1, single buffered']
    #allocation3 [shape = 's32[1]{0}', space=sflag, size = 0x4, scoped, tag = 'scoped memory for tpu_custom_call.1']
    #allocation4 [shape = 's32[1]{0}', space=sflag, size = 0x4, scoped, tag = 'scoped memory for tpu_custom_call.1']
    #allocation5 [shape = 'u8[32768]{0}', space=vmem, size = 0x8000, scoped, tag = 'input window, operand 2, single buffered']
    #allocation6 [shape = 's32[1]{0}', space=sflag, size = 0x4, scoped, tag = 'scoped memory for tpu_custom_call.1']
    #allocation7 [shape = 'u8[4096]{0}', space=vmem, size = 0x1000, scoped, tag = 'output window, operand 0, single buffered']
    #allocation8 [shape = 'u8[4096]{0}', space=vmem, size = 0x1000, scoped, tag = 'output window, operand 1, single buffered']
    #allocation9 [shape = 's32[1]{0}', space=sflag, size = 0x4, scoped, tag = 'scoped memory for tpu_custom_call.1']
    %12 = vsyncpa [#allocation3], 0
    %13 = vsyncpa [#allocation6], 0
    %14 = vsyncpa [#allocation4], 0
    %15 = vsyncpa [#allocation9], 0
    // Predicated region
    $region2: #{tpu_custom_call.1} parent=1 // pred_check
      _
    $region3: #{tpu_custom_call.1} parent=1 // pred_check_branch
      %17 = sbr.rel (0) target = $region5
    $region4: #{tpu_custom_call.1} parent=1 // pred_region
      _
    $region5: #{tpu_custom_call.1} parent=1 // pred_fallthru
      _
    // Predicated region
    $region6: #{tpu_custom_call.1} parent=1 // pred_check
      _
    $region7: #{tpu_custom_call.1} parent=1 // pred_check_branch
      %19 = sbr.rel (0) target = $region9
    $region8: #{tpu_custom_call.1} parent=1 // pred_region
      %s21 = ssub.s32 128, 128
      %22 = vsyncadd [#allocation3], %s21
      %s24 = sshll.u32 [#allocation2], 4
      %s25 = int_to_ptr.vmem [resolvable:$true] %s24
      %27 = dma.hbm_to_vmem [thread:$0]  %s1, 128, %s25, [#allocation3]
    $region9: #{tpu_custom_call.1} parent=1 // pred_fallthru
      _
    // Predicated region
    $region10: #{tpu_custom_call.1} parent=1 // pred_check
      _
    $region11: #{tpu_custom_call.1} parent=1 // pred_check_branch
      %29 = sbr.rel (0) target = $region13
    $region12: #{tpu_custom_call.1} parent=1 // pred_region
      %s31 = ssub.s32 1024, 1024
      %32 = vsyncadd [#allocation6], %s31
      %s33 = sshll.u32 [#allocation5], 4
      %s34 = int_to_ptr.vmem [resolvable:$true] %s33
      %39 = dma.hbm_to_vmem [thread:$0]  %s2, 1024, %s34, [#allocation6], 64, 64, 4
    $region13: #{tpu_custom_call.1} parent=1 // pred_fallthru
      _
    // Predicated region
    $region14: #{tpu_custom_call.1} parent=1 // pred_check
      _
    $region15: #{tpu_custom_call.1} parent=1 // pred_check_branch
      %41 = sbr.rel (0) target = $region17
    $region16: #{tpu_custom_call.1} parent=1 // pred_region
      _
    $region17: #{tpu_custom_call.1} parent=1 // pred_fallthru
      _
    // Predicated region
    $region18: #{tpu_custom_call.1} parent=1 // pred_check
      _
    $region19: #{tpu_custom_call.1} parent=1 // pred_check_branch
      %43 = sbr.rel (0) target = $region21
    $region20: #{tpu_custom_call.1} parent=1 // pred_region
      _
    $region21: #{tpu_custom_call.1} parent=1 // pred_fallthru
      _
    // Predicated region
    $region22: #{tpu_custom_call.1} parent=1 // pred_check
      _
    $region23: #{tpu_custom_call.1} parent=1 // pred_check_branch
      %45 = sbr.rel (0) target = $region25
    $region24: #{tpu_custom_call.1} parent=1 // pred_region
      %46 = dma.done [#allocation3], 128
    $region25: #{tpu_custom_call.1} parent=1 // pred_fallthru
      _
    // Predicated region
    $region26: #{tpu_custom_call.1} parent=1 // pred_check
      _
    $region27: #{tpu_custom_call.1} parent=1 // pred_check_branch
      %48 = sbr.rel (0) target = $region29
    $region28: #{tpu_custom_call.1} parent=1 // pred_region
      %49 = dma.done [#allocation6], 1024
    $region29: #{tpu_custom_call.1} parent=1 // pred_fallthru
      _
    %v51 = vld [vmem:[%s0] sm:$0xf]
    %v52 = vld [vmem:[#allocation2] sm:$0xff]
    %v53 = vld [vmem:[#allocation5] sm:$0xf]
    %v54 = vld [vmem:[#allocation5 + $0x4] sm:$0xf]
    %v55 = vld [vmem:[#allocation5 + $0x8] sm:$0xf]
    %v56 = vld [vmem:[#allocation5 + $0xc] sm:$0xf]
    %v57 = vld [vmem:[#allocation5 + $0x10] sm:$0xf]
    %v58 = vld [vmem:[#allocation5 + $0x14] sm:$0xf]
    %v59 = vld [vmem:[#allocation5 + $0x18] sm:$0xf]
    %v60 = vld [vmem:[#allocation5 + $0x1c] sm:$0xf]
    %v61 = vld [vmem:[#allocation5 + $0x20] sm:$0xf]
    %v62 = vld [vmem:[#allocation5 + $0x24] sm:$0xf]
    %v63 = vld [vmem:[#allocation5 + $0x28] sm:$0xf]
    %v64 = vld [vmem:[#allocation5 + $0x2c] sm:$0xf]
    %v65 = vld [vmem:[#allocation5 + $0x30] sm:$0xf]
    %v66 = vld [vmem:[#allocation5 + $0x34] sm:$0xf]
    %v67 = vld [vmem:[#allocation5 + $0x38] sm:$0xf]
    %v68 = vld [vmem:[#allocation5 + $0x3c] sm:$0xf]
    %v69 = vld [vmem:[%s3] sm:$0x1]
    %v71 = vlaneseq
    %v72 = vshrl.u32 %v71, 7
    %v73 = vsub.s32 0, %v72
    %v74 = vrot.slane %v69, %v73
    %v92 = vunpack.c.l.b16 %v53
    %v93 = vunpack.c.l.b16 %v54
    %v94 = vunpack.c.l.b16 %v55
    %v95 = vunpack.c.l.b16 %v56
    %v96 = vunpack.c.l.b16 %v57
    %v97 = vunpack.c.l.b16 %v58
    %v98 = vunpack.c.l.b16 %v59
    %v99 = vunpack.c.l.b16 %v60
    %v100 = vunpack.c.l.b16 %v61
    %v101 = vunpack.c.l.b16 %v62
    %v102 = vunpack.c.l.b16 %v63
    %v103 = vunpack.c.l.b16 %v64
    %v104 = vunpack.c.l.b16 %v65
    %v105 = vunpack.c.l.b16 %v66
    %v106 = vunpack.c.l.b16 %v67
    %v107 = vunpack.c.l.b16 %v68
    %v108 = vpack.c.b16 %v93, %v92
    %v109 = vpack.c.b16 %v95, %v94
    %v110 = vpack.c.b16 %v97, %v96
    %v111 = vpack.c.b16 %v99, %v98
    %v112 = vpack.c.b16 %v101, %v100
    %v113 = vpack.c.b16 %v103, %v102
    %v114 = vpack.c.b16 %v105, %v104
    %v115 = vpack.c.b16 %v107, %v106
    %124 = vmatprep.subr.bf16.mxu0 0
    %125 = vmatpush1.bf16.msra.mxu0 %v108
    %126 = vmatprep.subr.bf16.mxu0 0
    %127 = vmatpush1.bf16.msra.mxu0 %v109
    %128 = vmatprep.subr.bf16.mxu0 0
    %129 = vmatpush1.bf16.msra.mxu0 %v110
    %130 = vmatprep.subr.bf16.mxu0 0
    %131 = vmatpush1.bf16.msra.mxu0 %v111
    %132 = vmatprep.subr.bf16.mxu0 0
    %133 = vmatpush1.bf16.msra.mxu0 %v112
    %134 = vmatprep.subr.bf16.mxu0 0
    %135 = vmatpush1.bf16.msra.mxu0 %v113
    %136 = vmatprep.subr.bf16.mxu0 0
    %137 = vmatpush1.bf16.msra.mxu0 %v114
    %138 = vmatprep.subr.bf16.mxu0 0
    %139 = vmatpush1.bf16.msra.mxu0 %v115
    %140 = vmatprep.subr.bf16.mxu0 0
    %141 = vmatpush1.bf16.msra.mxu0 0
    %142 = vmatprep.subr.bf16.mxu0 0
    %143 = vmatpush1.bf16.msra.mxu0 0
    %144 = vmatprep.subr.bf16.mxu0 0
    %145 = vmatpush1.bf16.msra.mxu0 0
    %146 = vmatprep.subr.bf16.mxu0 0
    %147 = vmatpush1.bf16.msra.mxu0 0
    %148 = vmatprep.subr.bf16.mxu0 0
    %149 = vmatpush1.bf16.msra.mxu0 0
    %150 = vmatprep.subr.bf16.mxu0 0
    %151 = vmatpush1.bf16.msra.mxu0 0
    %152 = vmatprep.subr.bf16.mxu0 0
    %153 = vmatpush1.bf16.msra.mxu0 0
    %154 = vmatprep.subr.bf16.mxu0 0
    %155 = vmatpush1.bf16.msra.mxu0 0
    %156 = vmatprep.mubr.bf16.mxu0 0
    %157 = vmatmul.mubr.bf16.gmra.mrb[0].mxu0 %v51
    %v158 = vpop.f32.mrb[0].mxu0
    %v159 = vadd.f32 %v74, %v158
    %v160 = vpop.f32.mrb[0].mxu0
    %v161 = vpop.f32.mrb[0].mxu0
    %v162 = vpop.f32.mrb[0].mxu0
    %163 = vdwg.mxu0
    %v164 = vld [vmem:[%s4] sm:$0x1]
    %v165 = vld [vmem:[%s4 + $0x1] sm:$0x1]
    %v166 = vld [vmem:[%s4 + $0x2] sm:$0x1]
    %v167 = vlaneseq
    %v168 = vshrl.u32 %v167, 7
    %v169 = vsub.s32 0, %v168
    %v170 = vrot.slane %v164, %v169
    %v171 = vmul.f32 %v170, %v52
    %v172 = vadd.f32 %v159, %v171
    %v173 = vmul.f32 %v172, 0.5
    %v174 = vtanh.pop %v173
    %v175 = vmul.f32 %v174, 0.5
    %v176 = vadd.f32 %v175, 0.5
    %v177 = vlaneseq
    %v178 = vshrl.u32 %v177, 7
    %v179 = vsub.s32 0, %v178
    %v180 = vrot.slane %v165, %v179
    %v181 = vmul.f32 %v180, %v52
    %183 = vrot.lane.b32.xlu0 %v181, 32
    %v184 = vpop.permute.xlu0 %183
    %v186 = vadd.f32 %v159, %v184
    %v187 = vmul.f32 %v186, 0.5
    %v188 = vtanh.pop %v187
    %v189 = vmul.f32 %v188, 0.5
    %v190 = vadd.f32 %v189, 0.5
    %192 = vrot.lane.b32.xlu0 %v52, 32
    %v193 = vpop.permute.xlu0 %192
    %v195 = vmul.f32 %v190, %v193
    %v196 = vtanh.pop %v159
    %198 = vrot.lane.b32.xlu0 %v196, 32
    %v199 = vpop.permute.xlu0 %198
    %v201 = vmul.f32 %v176, %v199
    %203 = vrot.lane.b32.xlu0 %v201, 32
    %v204 = vpop.permute.xlu0 %203
    %v206 = vadd.f32 %v195, %v204
    %v207 = vlaneseq
    %v208 = vshrl.u32 %v207, 7
    %v209 = vsub.s32 0, %v208
    %v210 = vrot.slane %v166, %v209
    %212 = vrot.lane.b32.xlu0 %v206, 96
    %v213 = vpop.permute.xlu0 %212
    %v215 = vmul.f32 %v210, %v213
    %217 = vrot.lane.b32.xlu0 %v215, 64
    %v218 = vpop.permute.xlu0 %217
    %v220 = vadd.f32 %v159, %v218
    %v221 = vmul.f32 %v220, 0.5
    %v222 = vtanh.pop %v221
    %v223 = vmul.f32 %v222, 0.5
    %v224 = vadd.f32 %v223, 0.5
    %v225 = vtanh.pop %v206
    %227 = vrot.lane.b32.xlu0 %v225, 32
    %v228 = vpop.permute.xlu0 %227
    %v230 = vmul.f32 %v224, %v228
    %232 = vrot.lane.b32.xlu0 %v230, 64
    %v233 = vpop.permute.xlu0 %232
    %vm235 = vcmask 261120
    %236 = vst.msk [vmem:[#allocation7] sm:$0xff] %vm235, %v233
    %237 = vst.msk [vmem:[#allocation8] sm:$0xff] %vm235, %v213
    // Predicated region
    $region30: #{tpu_custom_call.1} parent=1 // pred_check
      _
    $region31: #{tpu_custom_call.1} parent=1 // pred_check_branch
      %239 = sbr.rel (0) target = $region33
    $region32: #{tpu_custom_call.1} parent=1 // pred_region
      %s241 = ssub.s32 128, 128
      %242 = vsyncadd [#allocation4], %s241
      %s244 = sshll.u32 [#allocation7], 4
      %s245 = int_to_ptr.vmem [resolvable:$true] %s244
      %247 = dma.vmem_to_hbm [thread:$0]  %s245, 128, %s5, [#allocation4]
    $region33: #{tpu_custom_call.1} parent=1 // pred_fallthru
      _
    // Predicated region
    $region34: #{tpu_custom_call.1} parent=1 // pred_check
      _
    $region35: #{tpu_custom_call.1} parent=1 // pred_check_branch
      %249 = sbr.rel (0) target = $region37
    $region36: #{tpu_custom_call.1} parent=1 // pred_region
      %s251 = ssub.s32 128, 128
      %252 = vsyncadd [#allocation9], %s251
      %s254 = sshll.u32 [#allocation8], 4
      %s255 = int_to_ptr.vmem [resolvable:$true] %s254
      %257 = dma.vmem_to_hbm [thread:$0]  %s255, 128, %s6, [#allocation9]
    $region37: #{tpu_custom_call.1} parent=1 // pred_fallthru
      _
    // Predicated region
    $region38: #{tpu_custom_call.1} parent=1 // pred_check
      _
    $region39: #{tpu_custom_call.1} parent=1 // pred_check_branch
      %259 = sbr.rel (0) target = $region41
    $region40: #{tpu_custom_call.1} parent=1 // pred_region
      %260 = dma.done [#allocation4], 128
    $region41: #{tpu_custom_call.1} parent=1 // pred_fallthru
      _
    // Predicated region
    $region42: #{tpu_custom_call.1} parent=1 // pred_check
      _
    $region43: #{tpu_custom_call.1} parent=1 // pred_check_branch
      %262 = sbr.rel (0) target = $region45
    $region44: #{tpu_custom_call.1} parent=1 // pred_region
      %263 = dma.done [#allocation9], 128
    $region45: #{tpu_custom_call.1} parent=1 // pred_fallthru
      _
    %264 = vsyncpa [#allocation3], 1
    %265 = vsyncpa [#allocation6], 1
    %266 = vsyncpa [#allocation4], 1
    %267 = vsyncpa [#allocation9], 1

</llo_original>
